<compile_context>
chip_gen: v6e
topology: v6e:2x2x1
jax: 0.10.0
libtpu: 0.0.40
codegen_flags: <defaults>
</compile_context>

<pallas_src>
import functools

import jax
import jax.numpy as jnp
from jax.experimental import pallas as pl
from jax.experimental.pallas import tpu as pltpu


def _round_up(x, m):
    return (x + m - 1) // m * m


def _nll_kernel(y_i_ref, r_i_ref, y_j_ref, r_j_ref, e_j_ref,
                out_ref, num_acc, den_acc):
    it = pl.program_id(1)

    @pl.when(it == 0)
    def _init():
        num_acc[...] = jnp.zeros_like(num_acc)
        den_acc[...] = jnp.zeros_like(den_acc)

    y_i = y_i_ref[...]                      # (TILE_I, 1)   i on sublanes
    exp_r_i = jnp.exp(r_i_ref[...])         # (TILE_I, 1)   EUP, negligible
    y_j = y_j_ref[...]                      # (1, TILE_J)   j on lanes

    # mask[i, j] = 1 if y[j] <= y[i]   (torch: mask[y.T - y > 0] = 0)
    mask = y_j <= y_i                       # (TILE_I, TILE_J) bool

    # numerator: select instead of cast+mul (one fewer VALU op per element)
    num_acc[...] += jnp.sum(jnp.where(mask, exp_r_i, 0.0), axis=0, keepdims=True)
    den_acc[...] += jnp.sum(mask.astype(jnp.float32), axis=0, keepdims=True)

    @pl.when(it == pl.num_programs(1) - 1)
    def _finalize():
        log_loss = jnp.log(num_acc[...] / den_acc[...])           # (1, TILE_J)
        out_ref[...] = (r_j_ref[...] - log_loss) * e_j_ref[...]   # (1, TILE_J)


@functools.partial(jax.jit, static_argnames=("tile_i", "tile_j"))
def negative_log_likelihood(risk_pred, y, e, *, tile_i=512, tile_j=1024):
    """risk_pred, y, e: arrays reshapeable to (N, 1). Returns scalar loss."""
    r = jnp.reshape(risk_pred, (-1,)).astype(jnp.float32)
    y = jnp.reshape(y, (-1,)).astype(jnp.float32)
    e = jnp.reshape(e, (-1,)).astype(jnp.float32)
    n = r.shape[0]

    # Clamp/round tile sizes to the (padded) problem size honoring (8, 128) tiling.
    tile_j = min(tile_j, _round_up(n, 128))
    tile_j = max(128, (tile_j // 128) * 128)           # lane dim: multiple of 128
    n_pad = _round_up(n, tile_j)
    tile_i = min(tile_i, n_pad)
    tile_i = max(8, (tile_i // 8) * 8)                 # sublane dim: multiple of 8
    while n_pad % tile_i:                              # must divide padded extent
        tile_i -= 8

    pad = n_pad - n
    # Padded rows: y = -inf  -> never in the risk set of any real sample (0 in num/den).
    # Padded cols: e = 0, r = 0 -> contribute exactly 0 to the final weighted sum.
    r_pad = jnp.pad(r, (0, pad))
    y_pad = jnp.pad(y, (0, pad), constant_values=float("-inf"))
    e_pad = jnp.pad(e, (0, pad))

    y_col = y_pad.reshape(n_pad, 1)
    r_col = r_pad.reshape(n_pad, 1)
    y_row = y_pad.reshape(1, n_pad)
    r_row = r_pad.reshape(1, n_pad)
    e_row = e_pad.reshape(1, n_pad)

    n_j = n_pad // tile_j
    n_i = n_pad // tile_i

    # Advisory cost hint for the XLA scheduler (O(N^2) elementwise work).
    cost = pl.CostEstimate(
        flops=5 * n_pad * n_pad,
        transcendentals=n_pad * n_j + n_pad,            # exp per (jt,it) step + final log
        bytes_accessed=4 * (2 * n_pad * n_j + 4 * n_pad),
    )

    terms = pl.pallas_call(
        _nll_kernel,
        out_shape=jax.ShapeDtypeStruct((1, n_pad), jnp.float32),
        grid_spec=pltpu.PrefetchScalarGridSpec(
            num_scalar_prefetch=0,
            grid=(n_j, n_i),
            in_specs=[
                pl.BlockSpec((tile_i, 1), lambda jt, it: (it, 0)),   # y, i-tile
                pl.BlockSpec((tile_i, 1), lambda jt, it: (it, 0)),   # r, i-tile
                pl.BlockSpec((1, tile_j), lambda jt, it: (0, jt)),   # y, j-tile
                pl.BlockSpec((1, tile_j), lambda jt, it: (0, jt)),   # r, j-tile
                pl.BlockSpec((1, tile_j), lambda jt, it: (0, jt)),   # e, j-tile
            ],
            out_specs=pl.BlockSpec((1, tile_j), lambda jt, it: (0, jt)),
            scratch_shapes=[
                pltpu.VMEM((1, tile_j), jnp.float32),   # num accumulator
                pltpu.VMEM((1, tile_j), jnp.float32),   # den accumulator
            ],
        ),
        compiler_params=pltpu.CompilerParams(
            dimension_semantics=("parallel", "arbitrary"),
            vmem_limit_bytes=40 * 1024 * 1024,
        ),
        cost_estimate=cost,
    )(y_col, r_col, y_row, r_row, e_row)

    # Tiny O(N) epilogue (loss scalar); padded lanes contribute exactly 0.
    return -jnp.sum(terms) / jnp.sum(e)


def _reference(risk_pred, y, e):
    """Pure-JAX reference mirroring the PyTorch forward exactly."""
    n = risk_pred.shape[0]
    r = jnp.reshape(risk_pred, (n, 1)).astype(jnp.float32)
    y = jnp.reshape(y, (n, 1)).astype(jnp.float32)
    e = jnp.reshape(e, (n, 1)).astype(jnp.float32)
    mask = jnp.where((y.T - y) > 0, 0.0, 1.0)                 # (N, N)
    log_loss = jnp.exp(r) * mask
    log_loss = jnp.sum(log_loss, axis=0) / jnp.sum(mask, axis=0)
    log_loss = jnp.log(log_loss).reshape(-1, 1)
    return -jnp.sum((r - log_loss) * e) / jnp.sum(e)


if __name__ == "__main__":
    key = jax.random.PRNGKey(0)
    k1, k2, k3 = jax.random.split(key, 3)

    # Small batch, deliberately not a multiple of (8, 128) to exercise padding
    # and a multi-tile (3 x 6) grid with the small demo tile sizes below.
    N = 300
    risk_pred = jax.random.normal(k1, (N, 1), dtype=jnp.float32)
    # survival times (ties allowed, like the docstring example)
    y = jax.random.randint(k2, (N, 1), minval=1, maxval=20).astype(jnp.float32)
    # event indicators; force at least one event so sum(e) > 0
    e = jax.random.bernoulli(k3, p=0.6, shape=(N, 1)).astype(jnp.float32)
    e = e.at[0, 0].set(1.0)

    ref = jax.block_until_ready(_reference(risk_pred, y, e))

    # Tiled configuration (multi-tile grid on both axes + padding).
    loss = negative_log_likelihood(risk_pred, y, e, tile_i=64, tile_j=128)
    loss = jax.block_until_ready(loss)
    assert jnp.allclose(loss, ref, rtol=1e-4, atol=1e-4), (loss, ref)

    # Default (large-tile) configuration — clamps to a single tile here.
    loss2 = jax.block_until_ready(negative_log_likelihood(risk_pred, y, e))
    assert jnp.allclose(loss2, ref, rtol=1e-4, atol=1e-4), (loss2, ref)

    # Non-multiple-of-128 user tile sizes get rounded safely.
    loss3 = jax.block_until_ready(
        negative_log_likelihood(risk_pred, y, e, tile_i=100, tile_j=200))
    assert jnp.allclose(loss3, ref, rtol=1e-4, atol=1e-4), (loss3, ref)

    print("KERNEL_OK")
</pallas_src>

<mosaic_0001>
module attributes {stable_mosaic.version = 11 : i64} {
  func.func @_nll_kernel(%arg0: i32, %arg1: i32, %arg2: memref<64x1xf32, #tpu.memory_space<vmem>>, %arg3: memref<64x1xf32, #tpu.memory_space<vmem>>, %arg4: memref<1x128xf32, #tpu.memory_space<vmem>>, %arg5: memref<1x128xf32, #tpu.memory_space<vmem>>, %arg6: memref<1x128xf32, #tpu.memory_space<vmem>>, %arg7: memref<1x128xf32, #tpu.memory_space<vmem>>, %arg8: memref<1x128xf32, #tpu.memory_space<vmem>>, %arg9: memref<1x128xf32, #tpu.memory_space<vmem>>) attributes {dimension_semantics = [#tpu.dimension_semantics<parallel>, #tpu.dimension_semantics<arbitrary>], iteration_bounds = array<i64: 3, 6>, scalar_prefetch = 0 : i64, scratch_operands = 2 : i64, tpu.core_type = #tpu.core_type<tc>, window_params = [{transform_indices = @transform_0, window_bounds = array<i64: 64, 1>}, {transform_indices = @transform_1, window_bounds = array<i64: 64, 1>}, {transform_indices = @transform_2, window_bounds = array<i64: 1, 128>}, {transform_indices = @transform_3, window_bounds = array<i64: 1, 128>}, {transform_indices = @transform_4, window_bounds = array<i64: 1, 128>}, {transform_indices = @transform_5, window_bounds = array<i64: 1, 128>}]} {
    %c0_i32 = arith.constant 0 : i32
    %0 = arith.cmpi eq, %arg1, %c0_i32 : i32
    %1 = arith.extui %0 : i1 to i32
    %c0_i32_0 = arith.constant 0 : i32
    %2 = arith.cmpi ne, %1, %c0_i32_0 : i32
    scf.if %2 {
      %cst_17 = arith.constant 0.000000e+00 : f32
      %29 = vector.broadcast %cst_17 : f32 to vector<1x128xf32>
      %c0_18 = arith.constant 0 : index
      %c0_19 = arith.constant 0 : index
      %30 = vector.load %arg8[%c0_18, %c0_19] : memref<1x128xf32, #tpu.memory_space<vmem>>, vector<1x128xf32>
      tpu.vector_store %arg8[%c0_18, %c0_19], %29 {strides = array<i32>} : memref<1x128xf32, #tpu.memory_space<vmem>>, vector<1x128xf32>,
      %cst_20 = arith.constant 0.000000e+00 : f32
      %31 = vector.broadcast %cst_20 : f32 to vector<1x128xf32>
      %c0_21 = arith.constant 0 : index
      %c0_22 = arith.constant 0 : index
      %32 = vector.load %arg9[%c0_21, %c0_22] : memref<1x128xf32, #tpu.memory_space<vmem>>, vector<1x128xf32>
      tpu.vector_store %arg9[%c0_21, %c0_22], %31 {strides = array<i32>} : memref<1x128xf32, #tpu.memory_space<vmem>>, vector<1x128xf32>,
    } else {
    }
    %c0 = arith.constant 0 : index
    %c0_1 = arith.constant 0 : index
    %3 = vector.load %arg2[%c0, %c0_1] : memref<64x1xf32, #tpu.memory_space<vmem>>, vector<64x1xf32>
    %c0_2 = arith.constant 0 : index
    %c0_3 = arith.constant 0 : index
    %4 = vector.load %arg3[%c0_2, %c0_3] : memref<64x1xf32, #tpu.memory_space<vmem>>, vector<64x1xf32>
    %5 = math.exp %4 : vector<64x1xf32>
    %c0_4 = arith.constant 0 : index
    %c0_5 = arith.constant 0 : index
    %6 = vector.load %arg4[%c0_4, %c0_5] : memref<1x128xf32, #tpu.memory_space<vmem>>, vector<1x128xf32>
    %7 = vector.broadcast %6 : vector<1x128xf32> to vector<64x128xf32>
    %8 = vector.broadcast %3 : vector<64x1xf32> to vector<64x128xf32>
    %9 = arith.cmpf ole, %7, %8 : vector<64x128xf32>
    %c0_6 = arith.constant 0 : index
    %c0_7 = arith.constant 0 : index
    %10 = vector.load %arg8[%c0_6, %c0_7] : memref<1x128xf32, #tpu.memory_space<vmem>>, vector<1x128xf32>
    %cst = arith.constant 0.000000e+00 : f32
    %11 = vector.shape_cast %5 : vector<64x1xf32> to vector<64x1xf32>
    %12 = vector.broadcast %11 : vector<64x1xf32> to vector<64x128xf32>
    %13 = vector.broadcast %cst : f32 to vector<64x128xf32>
    %14 = arith.select %9, %12, %13 : vector<64x128xi1>, vector<64x128xf32>
    %cst_8 = arith.constant dense<0.000000e+00> : vector<128xf32>
    %15 = vector.multi_reduction <add>, %14, %cst_8 [0] : vector<64x128xf32> to vector<128xf32>
    %16 = vector.shape_cast %15 : vector<128xf32> to vector<1x128xf32>
    %17 = arith.addf %10, %16 : vector<1x128xf32>
    %c0_9 = arith.constant 0 : index
    %c0_10 = arith.constant 0 : index
    %18 = vector.load %arg8[%c0_9, %c0_10] : memref<1x128xf32, #tpu.memory_space<vmem>>, vector<1x128xf32>
    tpu.vector_store %arg8[%c0_9, %c0_10], %17 {strides = array<i32>} : memref<1x128xf32, #tpu.memory_space<vmem>>, vector<1x128xf32>,
    %c0_11 = arith.constant 0 : index
    %c0_12 = arith.constant 0 : index
    %19 = vector.load %arg9[%c0_11, %c0_12] : memref<1x128xf32, #tpu.memory_space<vmem>>, vector<1x128xf32>
    %20 = arith.extui %9 : vector<64x128xi1> to vector<64x128xi32>
    %21 = arith.sitofp %20 : vector<64x128xi32> to vector<64x128xf32>
    %cst_13 = arith.constant dense<0.000000e+00> : vector<128xf32>
    %22 = vector.multi_reduction <add>, %21, %cst_13 [0] : vector<64x128xf32> to vector<128xf32>
    %23 = vector.shape_cast %22 : vector<128xf32> to vector<1x128xf32>
    %24 = arith.addf %19, %23 : vector<1x128xf32>
    %c0_14 = arith.constant 0 : index
    %c0_15 = arith.constant 0 : index
    %25 = vector.load %arg9[%c0_14, %c0_15] : memref<1x128xf32, #tpu.memory_space<vmem>>, vector<1x128xf32>
    tpu.vector_store %arg9[%c0_14, %c0_15], %24 {strides = array<i32>} : memref<1x128xf32, #tpu.memory_space<vmem>>, vector<1x128xf32>,
    %c5_i32 = arith.constant 5 : i32
    %26 = arith.cmpi eq, %arg1, %c5_i32 : i32
    %27 = arith.extui %26 : i1 to i32
    %c0_i32_16 = arith.constant 0 : i32
    %28 = arith.cmpi ne, %27, %c0_i32_16 : i32
    scf.if %28 {
      %c0_17 = arith.constant 0 : index
      %c0_18 = arith.constant 0 : index
      %29 = vector.load %arg8[%c0_17, %c0_18] : memref<1x128xf32, #tpu.memory_space<vmem>>, vector<1x128xf32>
      %c0_19 = arith.constant 0 : index
      %c0_20 = arith.constant 0 : index
      %30 = vector.load %arg9[%c0_19, %c0_20] : memref<1x128xf32, #tpu.memory_space<vmem>>, vector<1x128xf32>
      %31 = arith.divf %29, %30 : vector<1x128xf32>
      %32 = math.log %31 : vector<1x128xf32>
      %c0_21 = arith.constant 0 : index
      %c0_22 = arith.constant 0 : index
      %33 = vector.load %arg5[%c0_21, %c0_22] : memref<1x128xf32, #tpu.memory_space<vmem>>, vector<1x128xf32>
      %34 = arith.subf %33, %32 : vector<1x128xf32>
      %c0_23 = arith.constant 0 : index
      %c0_24 = arith.constant 0 : index
      %35 = vector.load %arg6[%c0_23, %c0_24] : memref<1x128xf32, #tpu.memory_space<vmem>>, vector<1x128xf32>
      %36 = arith.mulf %34, %35 : vector<1x128xf32>
      %c0_25 = arith.constant 0 : index
      %c0_26 = arith.constant 0 : index
      %37 = vector.load %arg7[%c0_25, %c0_26] : memref<1x128xf32, #tpu.memory_space<vmem>>, vector<1x128xf32>
      tpu.vector_store %arg7[%c0_25, %c0_26], %36 {strides = array<i32>} : memref<1x128xf32, #tpu.memory_space<vmem>>, vector<1x128xf32>,
    } else {
    }
    return
  }
  func.func @transform_0(%arg0: i32, %arg1: i32) -> (i32, i32) {
    %c0_i32 = arith.constant 0 : i32
    %c0_i32_0 = arith.constant 0 : i32
    return %arg1, %c0_i32 : i32, i32
  }
  func.func @transform_1(%arg0: i32, %arg1: i32) -> (i32, i32) {
    %c0_i32 = arith.constant 0 : i32
    %c0_i32_0 = arith.constant 0 : i32
    return %arg1, %c0_i32 : i32, i32
  }
  func.func @transform_2(%arg0: i32, %arg1: i32) -> (i32, i32) {
    %c0_i32 = arith.constant 0 : i32
    %c0_i32_0 = arith.constant 0 : i32
    return %c0_i32, %arg0 : i32, i32
  }
  func.func @transform_3(%arg0: i32, %arg1: i32) -> (i32, i32) {
    %c0_i32 = arith.constant 0 : i32
    %c0_i32_0 = arith.constant 0 : i32
    return %c0_i32, %arg0 : i32, i32
  }
  func.func @transform_4(%arg0: i32, %arg1: i32) -> (i32, i32) {
    %c0_i32 = arith.constant 0 : i32
    %c0_i32_0 = arith.constant 0 : i32
    return %c0_i32, %arg0 : i32, i32
  }
  func.func @transform_5(%arg0: i32, %arg1: i32) -> (i32, i32) {
    %c0_i32 = arith.constant 0 : i32
    %c0_i32_0 = arith.constant 0 : i32
    return %c0_i32, %arg0 : i32, i32
  }
}

</mosaic_0001>

<llo_original>
// kernel: negative_log_likelihood.1
$region0: #{negative_log_likelihood.1}
  #allocation0 [shape = 'u32[]', space=smem, size = 0x4, offset = 0x4, fixed_abs, tag = 'smem constant byte address 0x4 - core index']
  #allocation1 [shape = 'u32[144,128]{1,0:T(1,128)}', space=vmem, size = 0x12000, scoped, tag = 'internal scratch']
  #allocation2 [shape = 'f32[1,128]{1,0:T(1,128)}', space=vmem, size = 0x200, scoped, tag = 'scratch operand']
  #allocation3 [shape = 'f32[1,128]{1,0:T(1,128)}', space=vmem, size = 0x200, scoped, tag = 'scratch operand']
  %s0 = inlined_call_operand.vmem [shape: f32[384,1], index: 0, kind: input, shape index: {}]
  %s1 = inlined_call_operand.vmem [shape: f32[384,1], index: 1, kind: input, shape index: {}]
  %s2 = inlined_call_operand.vmem [shape: f32[1,384], index: 2, kind: input, shape index: {}]
  %s3 = inlined_call_operand.vmem [shape: f32[1,384], index: 3, kind: input, shape index: {}]
  %s4 = inlined_call_operand.vmem [shape: f32[1,384], index: 4, kind: input, shape index: {}]
  %s5 = inlined_call_operand.vmem [shape: f32[1,384], index: 5, kind: output, shape index: {}]
  %s6 = sld [smem:[#allocation0]]
  $region61: #{negative_log_likelihood.1} parent=0
    _
  %s8 = ssub.s32 1, %s6
  %s9 = scalar_select 0, %s8, %s6
  loop: start=0, step=1, limit=20
  $region2: #{negative_log_likelihood.1} parent=0 // loop_pre_header
    _
  $region3: #{negative_log_likelihood.1} parent=0 // loop_header
    %s11 = sphi 0, %s15
    %p12 = scmp.ge.s32.totalorder %s11, 20
    %s18 = sphi 0, %s30
    %s19 = sphi 0, %s26
    %s20 = sphi 0, %s18
    %s21 = sphi 0, %s19
    %s22 = sphi 0, %s20
    %s23 = sphi 0, %s21
    %s33 = sphi 0, %s35
    %s36 = sphi 0, %s33
    %s37 = sphi 0, %s36
    %s53 = sphi 0, %s37
    %s59 = sphi 0, %s61
    %s62 = sphi 0, %s59
    %s63 = sphi 0, %s62
    %s79 = sphi 0, %s63
    %s85 = sphi 0, %s87
    %s88 = sphi 0, %s85
    %s89 = sphi 0, %s88
    %s105 = sphi 0, %s89
    %s111 = sphi 0, %s113
    %s114 = sphi 0, %s111
    %s115 = sphi 0, %s114
    %s131 = sphi 0, %s115
    %s137 = sphi 0, %s139
    %s140 = sphi 0, %s137
    %s141 = sphi 0, %s140
    %s157 = sphi 0, %s141
    %s163 = sphi 0, %s165
    %s166 = sphi 0, %s163
    %s167 = sphi 0, %s166
    %s183 = sphi 0, %s167
  $region4: #{negative_log_likelihood.1} parent=0 // loop_header_branch
    %14 = sbr.rel (%p12) target = $region8
  $region5: #{negative_log_likelihood.1} parent=0 // loop_body
    %s16 = ssub.s32 %s11, 1
    %s17 = ssub.s32 %s11, 2
    %s24 = sadd.s32 1, %s19
    %p25 = scmp.ge.s32.totalorder %s24, 6
    %s26 = scalar_select %p25, 0, %s24
    %s27 = sadd.s32 1, %s18
    %s28 = scalar_select %p25, %s27, %s18
    %p29 = scmp.ge.s32.totalorder %s28, 3
    %s30 = scalar_select %p29, 0, %s28
    %s31 = ssub.s32 %s19, %s26
    %p32 = scmp.eq.s32.totalorder %s31, 0
    %s34 = sadd.s32 %s33, 1
    %s35 = scalar_select %p32, %s33, %s34
    %p38 = pneg %p32
    %p39 = scmp.eq.s32.totalorder %s11, 17
    %p40 = por %p38, %p39
    %p41 = scmp.ne.s32.totalorder %s33, %s36
    %p42 = scmp.eq.s32.totalorder %s11, 0
    %p43 = por %p41, %p42
    %p44 = scmp.ne.s32.totalorder %s33, %s36
    %p45 = scmp.eq.s32.totalorder %s16, 17
    %p46 = por %p44, %p45
    %p47 = scmp.ne.s32.totalorder %s36, %s37
    %p48 = scmp.eq.s32.totalorder %s16, 0
    %p49 = por %p47, %p48
    %p50 = scmp.ne.s32.totalorder %s36, %s37
    %p51 = scmp.eq.s32.totalorder %s17, 17
    %p52 = por %p50, %p51
    %p54 = scmp.ne.s32.totalorder %s37, %s53
    %p55 = scmp.eq.s32.totalorder %s17, 0
    %p56 = por %p54, %p55
    %s57 = ssub.s32 %s19, %s26
    %p58 = scmp.eq.s32.totalorder %s57, 0
    %s60 = sadd.s32 %s59, 1
    %s61 = scalar_select %p58, %s59, %s60
    %p64 = pneg %p58
    %p65 = scmp.eq.s32.totalorder %s11, 17
    %p66 = por %p64, %p65
    %p67 = scmp.ne.s32.totalorder %s59, %s62
    %p68 = scmp.eq.s32.totalorder %s11, 0
    %p69 = por %p67, %p68
    %p70 = scmp.ne.s32.totalorder %s59, %s62
    %p71 = scmp.eq.s32.totalorder %s16, 17
    %p72 = por %p70, %p71
    %p73 = scmp.ne.s32.totalorder %s62, %s63
    %p74 = scmp.eq.s32.totalorder %s16, 0
    %p75 = por %p73, %p74
    %p76 = scmp.ne.s32.totalorder %s62, %s63
    %p77 = scmp.eq.s32.totalorder %s17, 17
    %p78 = por %p76, %p77
    %p80 = scmp.ne.s32.totalorder %s63, %s79
    %p81 = scmp.eq.s32.totalorder %s17, 0
    %p82 = por %p80, %p81
    %s83 = ssub.s32 %s18, %s30
    %p84 = scmp.eq.s32.totalorder %s83, 0
    %s86 = sadd.s32 %s85, 1
    %s87 = scalar_select %p84, %s85, %s86
    %p90 = pneg %p84
    %p91 = scmp.eq.s32.totalorder %s11, 17
    %p92 = por %p90, %p91
    %p93 = scmp.ne.s32.totalorder %s85, %s88
    %p94 = scmp.eq.s32.totalorder %s11, 0
    %p95 = por %p93, %p94
    %p96 = scmp.ne.s32.totalorder %s85, %s88
    %p97 = scmp.eq.s32.totalorder %s16, 17
    %p98 = por %p96, %p97
    %p99 = scmp.ne.s32.totalorder %s88, %s89
    %p100 = scmp.eq.s32.totalorder %s16, 0
    %p101 = por %p99, %p100
    %p102 = scmp.ne.s32.totalorder %s88, %s89
    %p103 = scmp.eq.s32.totalorder %s17, 17
    %p104 = por %p102, %p103
    %p106 = scmp.ne.s32.totalorder %s89, %s105
    %p107 = scmp.eq.s32.totalorder %s17, 0
    %p108 = por %p106, %p107
    %s109 = ssub.s32 %s18, %s30
    %p110 = scmp.eq.s32.totalorder %s109, 0
    %s112 = sadd.s32 %s111, 1
    %s113 = scalar_select %p110, %s111, %s112
    %p116 = pneg %p110
    %p117 = scmp.eq.s32.totalorder %s11, 17
    %p118 = por %p116, %p117
    %p119 = scmp.ne.s32.totalorder %s111, %s114
    %p120 = scmp.eq.s32.totalorder %s11, 0
    %p121 = por %p119, %p120
    %p122 = scmp.ne.s32.totalorder %s111, %s114
    %p123 = scmp.eq.s32.totalorder %s16, 17
    %p124 = por %p122, %p123
    %p125 = scmp.ne.s32.totalorder %s114, %s115
    %p126 = scmp.eq.s32.totalorder %s16, 0
    %p127 = por %p125, %p126
    %p128 = scmp.ne.s32.totalorder %s114, %s115
    %p129 = scmp.eq.s32.totalorder %s17, 17
    %p130 = por %p128, %p129
    %p132 = scmp.ne.s32.totalorder %s115, %s131
    %p133 = scmp.eq.s32.totalorder %s17, 0
    %p134 = por %p132, %p133
    %s135 = ssub.s32 %s18, %s30
    %p136 = scmp.eq.s32.totalorder %s135, 0
    %s138 = sadd.s32 %s137, 1
    %s139 = scalar_select %p136, %s137, %s138
    %p142 = pneg %p136
    %p143 = scmp.eq.s32.totalorder %s11, 17
    %p144 = por %p142, %p143
    %p145 = scmp.ne.s32.totalorder %s137, %s140
    %p146 = scmp.eq.s32.totalorder %s11, 0
    %p147 = por %p145, %p146
    %p148 = scmp.ne.s32.totalorder %s137, %s140
    %p149 = scmp.eq.s32.totalorder %s16, 17
    %p150 = por %p148, %p149
    %p151 = scmp.ne.s32.totalorder %s140, %s141
    %p152 = scmp.eq.s32.totalorder %s16, 0
    %p153 = por %p151, %p152
    %p154 = scmp.ne.s32.totalorder %s140, %s141
    %p155 = scmp.eq.s32.totalorder %s17, 17
    %p156 = por %p154, %p155
    %p158 = scmp.ne.s32.totalorder %s141, %s157
    %p159 = scmp.eq.s32.totalorder %s17, 0
    %p160 = por %p158, %p159
    %s161 = ssub.s32 %s18, %s30
    %p162 = scmp.eq.s32.totalorder %s161, 0
    %s164 = sadd.s32 %s163, 1
    %s165 = scalar_select %p162, %s163, %s164
    %p168 = pneg %p162
    %p169 = scmp.eq.s32.totalorder %s11, 17
    %p170 = por %p168, %p169
    %p171 = scmp.ne.s32.totalorder %s163, %s166
    %p172 = scmp.eq.s32.totalorder %s11, 0
    %p173 = por %p171, %p172
    %p174 = scmp.ne.s32.totalorder %s163, %s166
    %p175 = scmp.eq.s32.totalorder %s16, 17
    %p176 = por %p174, %p175
    %p177 = scmp.ne.s32.totalorder %s166, %s167
    %p178 = scmp.eq.s32.totalorder %s16, 0
    %p179 = por %p177, %p178
    %p180 = scmp.ne.s32.totalorder %s166, %s167
    %p181 = scmp.eq.s32.totalorder %s17, 17
    %p182 = por %p180, %p181
    %p184 = scmp.ne.s32.totalorder %s167, %s183
    %p185 = scmp.eq.s32.totalorder %s17, 0
    %p186 = por %p184, %p185
    %p187 = scmp.le.s32.totalorder 1, %s11
    %p188 = scmp.lt.s32.totalorder %s11, 19
    %p189 = pnand %p187, %p188
    %p190 = pneg %p189
    // Predicated region
    $region9: #{negative_log_likelihood.1} parent=5 // pred_check
      _
    $region10: #{negative_log_likelihood.1} parent=5 // pred_check_branch
      %192 = sbr.rel (%p189) target = $region12
    $region11: #{negative_log_likelihood.1} parent=5 // pred_region
      %s193 = ssub.s32 %s11, 1
    $region12: #{negative_log_likelihood.1} parent=5 // pred_fallthru
      _
    %p194 = scmp.lt.s32.totalorder %s11, 18
    // Predicated region
    $region13: #{negative_log_likelihood.1} parent=5 // pred_check
      %p195 = pneg %p194
    $region14: #{negative_log_likelihood.1} parent=5 // pred_check_branch
      %197 = sbr.rel (%p195) target = $region16
    $region15: #{negative_log_likelihood.1} parent=5 // pred_region
      // Predicated region
      $region17: #{negative_log_likelihood.1} parent=15 // pred_check
        %p198 = pneg %p43
      $region18: #{negative_log_likelihood.1} parent=15 // pred_check_branch
        %200 = sbr.rel (%p198) target = $region20
      $region19: #{negative_log_likelihood.1} parent=15 // pred_region
        %s201 = smul.u32 8, %s19
        %p202 = scmp.lt.s32.totalorder %s201, 47
        %s203 = scalar_select %p202, %s201, 47
        %s204 = smul.addr %s203, 8
        %s205 = scalar_lea.vmem %s0, %s204
        %s206 = smul.u32 8, %s19
      $region20: #{negative_log_likelihood.1} parent=15 // pred_fallthru
        _
      // Predicated region
      $region21: #{negative_log_likelihood.1} parent=15 // pred_check
        %p207 = pneg %p69
      $region22: #{negative_log_likelihood.1} parent=15 // pred_check_branch
        %209 = sbr.rel (%p207) target = $region24
      $region23: #{negative_log_likelihood.1} parent=15 // pred_region
        %s210 = smul.u32 8, %s19
        %p211 = scmp.lt.s32.totalorder %s210, 47
        %s212 = scalar_select %p211, %s210, 47
        %s213 = smul.addr %s212, 8
        %s214 = scalar_lea.vmem %s1, %s213
        %s215 = smul.u32 8, %s19
      $region24: #{negative_log_likelihood.1} parent=15 // pred_fallthru
        _
      // Predicated region
      $region25: #{negative_log_likelihood.1} parent=15 // pred_check
        %p216 = pneg %p95
      $region26: #{negative_log_likelihood.1} parent=15 // pred_check_branch
        %218 = sbr.rel (%p216) target = $region28
      $region27: #{negative_log_likelihood.1} parent=15 // pred_region
        %p219 = scmp.lt.s32.totalorder %s18, 2
        %s220 = scalar_select %p219, %s18, 2
        %s221 = scalar_lea.vmem %s2, %s220
      $region28: #{negative_log_likelihood.1} parent=15 // pred_fallthru
        _
      // Predicated region
      $region29: #{negative_log_likelihood.1} parent=15 // pred_check
        %p222 = pneg %p121
      $region30: #{negative_log_likelihood.1} parent=15 // pred_check_branch
        %224 = sbr.rel (%p222) target = $region32
      $region31: #{negative_log_likelihood.1} parent=15 // pred_region
        %p225 = scmp.lt.s32.totalorder %s18, 2
        %s226 = scalar_select %p225, %s18, 2
        %s227 = scalar_lea.vmem %s3, %s226
      $region32: #{negative_log_likelihood.1} parent=15 // pred_fallthru
        _
      // Predicated region
      $region33: #{negative_log_likelihood.1} parent=15 // pred_check
        %p228 = pneg %p147
      $region34: #{negative_log_likelihood.1} parent=15 // pred_check_branch
        %230 = sbr.rel (%p228) target = $region36
      $region35: #{negative_log_likelihood.1} parent=15 // pred_region
        %p231 = scmp.lt.s32.totalorder %s18, 2
        %s232 = scalar_select %p231, %s18, 2
        %s233 = scalar_lea.vmem %s4, %s232
      $region36: #{negative_log_likelihood.1} parent=15 // pred_fallthru
        _
    $region16: #{negative_log_likelihood.1} parent=5 // pred_fallthru
      _
    %p234 = scmp.le.s32.totalorder 1, %s11
    %p235 = scmp.lt.s32.totalorder %s11, 19
    %p236 = pnand %p234, %p235
    %p237 = pneg %p236
    // Predicated region
    $region37: #{negative_log_likelihood.1} parent=5 // pred_check
      _
    $region38: #{negative_log_likelihood.1} parent=5 // pred_check_branch
      %239 = sbr.rel (%p236) target = $region40
    $region39: #{negative_log_likelihood.1} parent=5 // pred_region
      %s240 = ssub.s32 %s11, 1
      %s241 = smul.u32 8, %s21
      %p242 = scmp.lt.s32.totalorder %s241, 47
      %s243 = scalar_select %p242, %s241, 47
      %s244 = smul.addr %s243, 8
      %s245 = scalar_lea.vmem %s0, %s244
      %p246 = pneg %p49
      %p247 = pneg %p46
      %s248 = smul.u32 8, %s21
      %p249 = scmp.lt.s32.totalorder %s248, 47
      %s250 = scalar_select %p249, %s248, 47
      %s251 = smul.addr %s250, 8
      %s252 = scalar_lea.vmem %s1, %s251
      %p253 = pneg %p75
      %p254 = pneg %p72
      %p255 = scmp.lt.s32.totalorder %s20, 2
      %s256 = scalar_select %p255, %s20, 2
      %s257 = scalar_lea.vmem %s2, %s256
      %p258 = pneg %p101
      %p259 = pneg %p98
      %p260 = scmp.lt.s32.totalorder %s20, 2
      %s261 = scalar_select %p260, %s20, 2
      %s262 = scalar_lea.vmem %s3, %s261
      %p263 = pneg %p127
      %p264 = pneg %p124
      %p265 = scmp.lt.s32.totalorder %s20, 2
      %s266 = scalar_select %p265, %s20, 2
      %s267 = scalar_lea.vmem %s4, %s266
      %p268 = pneg %p153
      %p269 = pneg %p150
      %p270 = pneg %p179
      %p271 = pneg %p176
      %p272 = scmp.lt.s32.totalorder %s20, 2
      %s273 = scalar_select %p272, %s20, 2
      %s274 = scalar_lea.vmem %s5, %s273
      %s275 = smul.u32 8, %s21
      %p276 = scmp.lt.s32.totalorder %s275, 47
      %s277 = scalar_select %p276, %s275, 47
      %s278 = smul.addr %s277, 8
      %s279 = scalar_lea.vmem %s0, %s278
      %s280 = smul.u32 8, %s21
      %s281 = smul.u32 8, %s21
      %p282 = scmp.lt.s32.totalorder %s281, 47
      %s283 = scalar_select %p282, %s281, 47
      %s284 = smul.addr %s283, 8
      %s285 = scalar_lea.vmem %s1, %s284
      %s286 = smul.u32 8, %s21
      %p287 = scmp.lt.s32.totalorder %s20, 2
      %s288 = scalar_select %p287, %s20, 2
      %s289 = scalar_lea.vmem %s2, %s288
      %p290 = scmp.lt.s32.totalorder %s20, 2
      %s291 = scalar_select %p290, %s20, 2
      %s292 = scalar_lea.vmem %s3, %s291
      %p293 = scmp.lt.s32.totalorder %s20, 2
      %s294 = scalar_select %p293, %s20, 2
      %s295 = scalar_lea.vmem %s4, %s294
      %p296 = scmp.lt.s32.totalorder %s20, 2
      %s297 = scalar_select %p296, %s20, 2
      %s298 = scalar_lea.vmem %s5, %s297
      %p299 = scmp.eq.s32.totalorder %s21, 0
      // Predicated region
      $region41: #{negative_log_likelihood.1} parent=39 // pred_check
        %p300 = pneg %p299
      $region42: #{negative_log_likelihood.1} parent=39 // pred_check_branch
        %302 = sbr.rel (%p300) target = $region44
      $region43: #{negative_log_likelihood.1} parent=39 // pred_region
        %303 = vst [vmem:[#allocation2] sm:$0x1] 0.0
        %304 = vst [vmem:[#allocation3] sm:$0x1] 0.0
      $region44: #{negative_log_likelihood.1} parent=39 // pred_fallthru
        _
      %v305 = vld [vmem:[%s279] sm:$0xff]
      %v306 = vld [vmem:[%s279 + $0x8] sm:$0xff]
      %v307 = vld [vmem:[%s279 + $0x10] sm:$0xff]
      %v308 = vld [vmem:[%s279 + $0x18] sm:$0xff]
      %v309 = vld [vmem:[%s279 + $0x20] sm:$0xff]
      %v310 = vld [vmem:[%s279 + $0x28] sm:$0xff]
      %v311 = vld [vmem:[%s279 + $0x30] sm:$0xff]
      %v312 = vld [vmem:[%s279 + $0x38] sm:$0xff]
      %v313 = vld [vmem:[%s285] sm:$0xff]
      %v314 = vld [vmem:[%s285 + $0x8] sm:$0xff]
      %v315 = vld [vmem:[%s285 + $0x10] sm:$0xff]
      %v316 = vld [vmem:[%s285 + $0x18] sm:$0xff]
      %v317 = vld [vmem:[%s285 + $0x20] sm:$0xff]
      %v318 = vld [vmem:[%s285 + $0x28] sm:$0xff]
      %v319 = vld [vmem:[%s285 + $0x30] sm:$0xff]
      %v320 = vld [vmem:[%s285 + $0x38] sm:$0xff]
      %v321 = vmul.f32 %v313, 1.442695
      %v322 = vpow.pop %v321
      %v323 = vmul.f32 %v314, 1.442695
      %v324 = vpow.pop %v323
      %v325 = vmul.f32 %v315, 1.442695
      %v326 = vpow.pop %v325
      %v327 = vmul.f32 %v316, 1.442695
      %v328 = vpow.pop %v327
      %v329 = vmul.f32 %v317, 1.442695
      %v330 = vpow.pop %v329
      %v331 = vmul.f32 %v318, 1.442695
      %v332 = vpow.pop %v331
      %v333 = vmul.f32 %v319, 1.442695
      %v334 = vpow.pop %v333
      %v335 = vmul.f32 %v320, 1.442695
      %v336 = vpow.pop %v335
      %v337 = vld [vmem:[%s289] sm:$0x1]
      %v339 = vlaneseq
      %v340 = vshrl.u32 %v339, 7
      %v341 = vsub.s32 0, %v340
      %v342 = vrot.slane %v337, %v341
      %345 = vset.pattern.permute.xlu0 0
      %346 = vperm.xlu0 %345, %v305
      %v347 = vpop.permute.xlu0 %346
      %350 = vset.pattern.permute.xlu0 0
      %351 = vperm.xlu0 %350, %v306
      %v352 = vpop.permute.xlu0 %351
      %355 = vset.pattern.permute.xlu0 0
      %356 = vperm.xlu0 %355, %v307
      %v357 = vpop.permute.xlu0 %356
      %360 = vset.pattern.permute.xlu0 0
      %361 = vperm.xlu0 %360, %v308
      %v362 = vpop.permute.xlu0 %361
      %365 = vset.pattern.permute.xlu0 0
      %366 = vperm.xlu0 %365, %v309
      %v367 = vpop.permute.xlu0 %366
      %370 = vset.pattern.permute.xlu0 0
      %371 = vperm.xlu0 %370, %v310
      %v372 = vpop.permute.xlu0 %371
      %375 = vset.pattern.permute.xlu0 0
      %376 = vperm.xlu0 %375, %v311
      %v377 = vpop.permute.xlu0 %376
      %380 = vset.pattern.permute.xlu0 0
      %381 = vperm.xlu0 %380, %v312
      %v382 = vpop.permute.xlu0 %381
      %vm384 = vcmp.le.f32.partialorder %v342, %v347
      %vm385 = vcmp.le.f32.partialorder %v342, %v352
      %vm386 = vcmp.le.f32.partialorder %v342, %v357
      %vm387 = vcmp.le.f32.partialorder %v342, %v362
      %vm388 = vcmp.le.f32.partialorder %v342, %v367
      %vm389 = vcmp.le.f32.partialorder %v342, %v372
      %vm390 = vcmp.le.f32.partialorder %v342, %v377
      %vm391 = vcmp.le.f32.partialorder %v342, %v382
      %v392 = vld [vmem:[#allocation2] sm:$0x1]
      %394 = vset.pattern.permute.xlu0 0
      %395 = vperm.xlu0 %394, %v322
      %v396 = vpop.permute.xlu0 %395
      %399 = vset.pattern.permute.xlu0 0
      %400 = vperm.xlu0 %399, %v324
      %v401 = vpop.permute.xlu0 %400
      %404 = vset.pattern.permute.xlu0 0
      %405 = vperm.xlu0 %404, %v326
      %v406 = vpop.permute.xlu0 %405
      %409 = vset.pattern.permute.xlu0 0
      %410 = vperm.xlu0 %409, %v328
      %v411 = vpop.permute.xlu0 %410
      %414 = vset.pattern.permute.xlu0 0
      %415 = vperm.xlu0 %414, %v330
      %v416 = vpop.permute.xlu0 %415
      %419 = vset.pattern.permute.xlu0 0
      %420 = vperm.xlu0 %419, %v332
      %v421 = vpop.permute.xlu0 %420
      %424 = vset.pattern.permute.xlu0 0
      %425 = vperm.xlu0 %424, %v334
      %v426 = vpop.permute.xlu0 %425
      %429 = vset.pattern.permute.xlu0 0
      %430 = vperm.xlu0 %429, %v336
      %v431 = vpop.permute.xlu0 %430
      %v433 = vsel %vm384, %v396, 0.0
      %v434 = vsel %vm385, %v401, 0.0
      %v435 = vsel %vm386, %v406, 0.0
      %v436 = vsel %vm387, %v411, 0.0
      %v437 = vsel %vm388, %v416, 0.0
      %v438 = vsel %vm389, %v421, 0.0
      %v439 = vsel %vm390, %v426, 0.0
      %v440 = vsel %vm391, %v431, 0.0
      %v441 = vadd.f32 %v433, %v434
      %v442 = vadd.f32 %v441, %v435
      %v443 = vadd.f32 %v442, %v436
      %v444 = vadd.f32 %v443, %v437
      %v445 = vadd.f32 %v444, %v438
      %v446 = vadd.f32 %v445, %v439
      %v447 = vadd.f32 %v446, %v440
      %v448 = vrot.slane %v447, 4
      %v449 = vadd.f32 %v447, %v448
      %v450 = vrot.slane %v449, 2
      %v451 = vadd.f32 %v449, %v450
      %v452 = vrot.slane %v451, 1
      %v453 = vadd.f32 %v451, %v452
      %v454 = vadd.f32 %v392, %v453
      %455 = vst [vmem:[#allocation2] sm:$0x1] %v454
      %v456 = vld [vmem:[#allocation3] sm:$0x1]
      %v457 = vsel %vm384, 1, 0
      %v458 = vsel %vm385, 1, 0
      %v459 = vsel %vm386, 1, 0
      %v460 = vsel %vm387, 1, 0
      %v461 = vsel %vm388, 1, 0
      %v462 = vsel %vm389, 1, 0
      %v463 = vsel %vm390, 1, 0
      %v464 = vsel %vm391, 1, 0
      %v465 = vcvt.s32.f32 %v457
      %v466 = vcvt.s32.f32 %v458
      %v467 = vcvt.s32.f32 %v459
      %v468 = vcvt.s32.f32 %v460
      %v469 = vcvt.s32.f32 %v461
      %v470 = vcvt.s32.f32 %v462
      %v471 = vcvt.s32.f32 %v463
      %v472 = vcvt.s32.f32 %v464
      %v473 = vadd.f32 %v465, %v466
      %v474 = vadd.f32 %v473, %v467
      %v475 = vadd.f32 %v474, %v468
      %v476 = vadd.f32 %v475, %v469
      %v477 = vadd.f32 %v476, %v470
      %v478 = vadd.f32 %v477, %v471
      %v479 = vadd.f32 %v478, %v472
      %v480 = vrot.slane %v479, 4
      %v481 = vadd.f32 %v479, %v480
      %v482 = vrot.slane %v481, 2
      %v483 = vadd.f32 %v481, %v482
      %v484 = vrot.slane %v483, 1
      %v485 = vadd.f32 %v483, %v484
      %v486 = vadd.f32 %v456, %v485
      %487 = vst [vmem:[#allocation3] sm:$0x1] %v486
      %p488 = scmp.eq.s32.totalorder %s21, 5
      // Predicated region
      $region45: #{negative_log_likelihood.1} parent=39 // pred_check
        %p489 = pneg %p488
      $region46: #{negative_log_likelihood.1} parent=39 // pred_check_branch
        %491 = sbr.rel (%p489) target = $region48
      $region47: #{negative_log_likelihood.1} parent=39 // pred_region
        %v492 = vld [vmem:[#allocation2] sm:$0x1]
        %v493 = vld [vmem:[#allocation3] sm:$0x1]
        %v494 = vrcp.pop %v493
        %v495 = vmul.f32 %v492, %v494
        %v496 = vlog2.pop %v495
        %v497 = vmul.f32 %v496, 0.6931472
        %v498 = vld [vmem:[%s292] sm:$0x1]
        %v499 = vsub.f32 %v498, %v497
        %v500 = vld [vmem:[%s295] sm:$0x1]
        %v501 = vmul.f32 %v499, %v500
        %502 = vst [vmem:[%s298] sm:$0x1] %v501
      $region48: #{negative_log_likelihood.1} parent=39 // pred_fallthru
        _
      %p503 = scmp.lt.s32.totalorder %s20, 2
      %s504 = scalar_select %p503, %s20, 2
      %s505 = scalar_lea.vmem %s5, %s504
      // Predicated region
      $region49: #{negative_log_likelihood.1} parent=39 // pred_check
        %p506 = pneg %p176
      $region50: #{negative_log_likelihood.1} parent=39 // pred_check_branch
        %508 = sbr.rel (%p506) target = $region52
      $region51: #{negative_log_likelihood.1} parent=39 // pred_region
        _
      $region52: #{negative_log_likelihood.1} parent=39 // pred_fallthru
        _
    $region40: #{negative_log_likelihood.1} parent=5 // pred_fallthru
      _
    %p509 = scmp.le.s32.totalorder 2, %s11
    // Predicated region
    $region53: #{negative_log_likelihood.1} parent=5 // pred_check
      %p510 = pneg %p509
    $region54: #{negative_log_likelihood.1} parent=5 // pred_check_branch
      %512 = sbr.rel (%p510) target = $region56
    $region55: #{negative_log_likelihood.1} parent=5 // pred_region
      %s513 = ssub.s32 %s11, 2
      // Predicated region
      $region57: #{negative_log_likelihood.1} parent=55 // pred_check
        %p514 = pneg %p182
      $region58: #{negative_log_likelihood.1} parent=55 // pred_check_branch
        %516 = sbr.rel (%p514) target = $region60
      $region59: #{negative_log_likelihood.1} parent=55 // pred_region
        %p517 = scmp.lt.s32.totalorder %s22, 2
        %s518 = scalar_select %p517, %s22, 2
        %s519 = scalar_lea.vmem %s5, %s518
      $region60: #{negative_log_likelihood.1} parent=55 // pred_fallthru
        _
    $region56: #{negative_log_likelihood.1} parent=5 // pred_fallthru
      _
  $region6: #{negative_log_likelihood.1} parent=0 // loop_footer
    %s15 = sadd.s32 1, %s11
  $region7: #{negative_log_likelihood.1} parent=0 // loop_footer_branch
    %10 = sbr.rel target = $region3
  $region8: #{negative_log_likelihood.1} parent=0 // loop_exit
    _

</llo_original>
